<compile_context>
chip_gen: v5e
topology: v5e:2x2
jax: 0.10.0
libtpu: 0.0.40
codegen_flags: <defaults>
</compile_context>

<pallas_src>
from functools import lru_cache

import numpy as np
import jax
import jax.numpy as jnp
from jax.experimental import pallas as pl
from jax.experimental.pallas import tpu as pltpu
from scipy.optimize import linear_sum_assignment

N_PAD = 128  # targets padded to a full lane width


def _round_up(x, m):
    return ((x + m - 1) // m) * m


def _choose_tile(M):
    """Row-tile choice: big enough to amortize per-step overhead, multiple of
    8, and (when M is not tiny) at least 2 grid steps for v7x dual-TC."""
    if M <= 16:
        return _round_up(max(M, 8), 8)
    half = _round_up((M + 1) // 2, 8)
    return min(1024, half)


def _make_cost_kernel(K, w_boxes, w_kp, w_giou, iou_thresh):
    """Pairwise cost kernel.

    pred_ref: (TM, 10+K) columns =
       0:px 1:py 2:pw 3:ph 4:px-.5pw 5:px+.5pw 6:py-.5ph 7:py+.5ph
       8:pw*ph 9:(-w_obj*conf) 10..: keypoints
    tgt_ref: (9+K, 128) rows =
       0:tcx 1:tcy 2:tw 3:th 4:tx0 5:tx1 6:ty0 7:ty1 8:tw*th 9..: keypoints
    """

    def kernel(pred_ref, tgt_ref, c_ref):
        pred = pred_ref[...]
        tgt = tgt_ref[...]

        px = pred[:, 0:1]
        py = pred[:, 1:2]
        pw = pred[:, 2:3]
        ph = pred[:, 3:4]
        px0 = pred[:, 4:5]
        px1 = pred[:, 5:6]
        py0 = pred[:, 6:7]
        py1 = pred[:, 7:8]
        parea = pred[:, 8:9]
        obj_col = pred[:, 9:10]          # already -w_obj * conf

        tcx = tgt[0:1, :]
        tcy = tgt[1:2, :]
        tw = tgt[2:3, :]
        th = tgt[3:4, :]
        tx0 = tgt[4:5, :]
        tx1 = tgt[5:6, :]
        ty0 = tgt[6:7, :]
        ty1 = tgt[7:8, :]
        tarea = tgt[8:9, :]

        # --- pairwise L1 box cost (torch.cdist p=1 on cx,cy,w,h) ---
        cost_box = (jnp.abs(px - tcx) + jnp.abs(py - tcy)
                    + jnp.abs(pw - tw) + jnp.abs(ph - th))     # (TM, N_PAD)

        # --- pairwise L1 keypoint cost ---
        cost_kp = jnp.abs(pred[:, 10:11] - tgt[9:10, :])
        for k in range(1, K):                                  # K small, static
            cost_kp = cost_kp + jnp.abs(pred[:, 10 + k:11 + k]
                                        - tgt[9 + k:10 + k, :])

        # --- pairwise IoU (corners / areas were hoisted out of the kernel) ---
        iw = jnp.maximum(jnp.minimum(px1, tx1) - jnp.maximum(px0, tx0), 0.0)
        ih = jnp.maximum(jnp.minimum(py1, ty1) - jnp.maximum(py0, ty0), 0.0)
        inter = iw * ih
        union = parea + tarea - inter
        iou = inter * pl.reciprocal(union + 1e-9, approx=False)

        c = (w_kp * cost_kp + w_boxes * cost_box - w_giou * iou + obj_col)
        if iou_thresh is not None:
            c = c + jnp.where(iou < iou_thresh, 1e10, 0.0)
        c_ref[...] = c

    return kernel


@lru_cache(maxsize=64)
def _build_cost_fn(B, G, K, N, anchor, w_boxes, w_kp, w_giou, w_obj,
                   iou_thresh):
    """Build (and cache) a jitted fn: predictions + targets -> (B, G*G, N)."""
    assert N <= N_PAD, "more than 128 targets not supported by this kernel"
    M = B * G * G
    TM = _choose_tile(M)
    M_pad = _round_up(M, TM)
    F_pred = 10 + K
    F_tgt = 9 + K
    a0, a1 = float(anchor[0]), float(anchor[1])

    kernel = _make_cost_kernel(K, w_boxes, w_kp, w_giou, iou_thresh)

    cost_call = pl.pallas_call(
        kernel,
        out_shape=jax.ShapeDtypeStruct((M_pad, N_PAD), jnp.float32),
        grid=(M_pad // TM,),
        in_specs=[
            pl.BlockSpec((TM, F_pred), lambda i: (i, 0)),
            pl.BlockSpec((F_tgt, N_PAD), lambda i: (0, 0)),
        ],
        out_specs=pl.BlockSpec((TM, N_PAD), lambda i: (i, 0)),
        compiler_params=pltpu.CompilerParams(
            dimension_semantics=("parallel",)),
    )

    def fwd(pred_boxes, pred_kp, pred_conf, tgt_boxes, tgt_kp):
        pb = pred_boxes.astype(jnp.float32)
        off = jnp.arange(G, dtype=jnp.float32)
        px = (pb[..., 0] + off[None, None, :]).reshape(M, 1)   # + col index
        py = (pb[..., 1] + off[None, :, None]).reshape(M, 1)   # + row index
        pw = (jnp.exp(pb[..., 3]) * a0).reshape(M, 1)
        ph = (jnp.exp(pb[..., 4]) * a1).reshape(M, 1)
        conf = pred_conf.reshape(M, 1).astype(jnp.float32)
        kp = pred_kp.reshape(M, K).astype(jnp.float32)

        pred = jnp.concatenate([
            px, py, pw, ph,
            px - 0.5 * pw, px + 0.5 * pw,
            py - 0.5 * ph, py + 0.5 * ph,
            pw * ph,
            (-w_obj) * conf,
            kp,
        ], axis=1)
        if M_pad != M:
            pred = jnp.pad(pred, ((0, M_pad - M), (0, 0)))

        tb = tgt_boxes.astype(jnp.float32)                      # (N, 4) cxcywh
        tcx, tcy, tw, th = tb[:, 0], tb[:, 1], tb[:, 2], tb[:, 3]
        tgt_rows = jnp.stack([
            tcx, tcy, tw, th,
            tcx - 0.5 * tw, tcx + 0.5 * tw,
            tcy - 0.5 * th, tcy + 0.5 * th,
            tw * th,
        ], axis=0)                                              # (9, N)
        tgt_full = jnp.concatenate(
            [tgt_rows, tgt_kp.astype(jnp.float32).T], axis=0)   # (9+K, N)
        tgt_full = jnp.pad(tgt_full, ((0, 0), (0, N_PAD - N)))

        C = cost_call(pred, tgt_full)
        # device-side slice: only ship the real (M, N) costs to the host
        return C[:M, :N].reshape(B, G * G, N)

    return jax.jit(fwd)


def hungarian_matcher_forward(outputs, targets, anchor,
                              cost_boxes=1.0, cost_keypoint=1.0,
                              cost_giou=1.0, cost_obj=1.0, iou_thresh=None):
    pk = outputs['pred_keypoints']     # (B, G, G, K)
    pb = outputs['pred_boxes']         # (B, G, G, 6)
    pc = outputs['pred_confidence']    # (B, G, G, 1)
    B, G = pk.shape[:2]
    K = pk.shape[-1]

    # ---- target glue (mirrors the numpy/rearrange code in the module) ----
    tb_np = np.concatenate([np.asarray(v) for v in targets['boxes']], axis=0)
    tk_np = np.concatenate([np.asarray(v) for v in targets['keypoints']],
                           axis=0)
    N = tb_np.shape[0]
    if N == 0:
        return [(np.zeros(0, np.int64), np.zeros(0, np.int64))
                for _ in targets['boxes']], np.zeros((B, G * G, 0), np.float32)
    tgt_boxes = tb_np.reshape(N, -1)[:, [0, 1, 3, 4]].astype(np.float32) * G
    tgt_kp = tk_np.reshape(N, -1).astype(np.float32)
    assert tgt_kp.shape[1] == K

    fwd = _build_cost_fn(int(B), int(G), int(K), int(N),
                         tuple(float(a) for a in anchor),
                         float(cost_boxes), float(cost_keypoint),
                         float(cost_giou), float(cost_obj),
                         None if iou_thresh is None else float(iou_thresh))

    C_dev = fwd(pb, pk, pc, jnp.asarray(tgt_boxes), jnp.asarray(tgt_kp))
    jax.block_until_ready(C_dev)
    C = np.asarray(C_dev)                                       # (B, G*G, N)

    # ---- host-side Hungarian assignment per batch element ----
    # TODO(synk): linear_sum_assignment is a sequential host algorithm with no
    # clean Pallas equivalent; it runs on CPU over the kernel-produced costs.
    sizes = [np.asarray(v).shape[0] for v in targets['boxes']]
    indices = []
    start = 0
    for i, s in enumerate(sizes):
        cm = C[i, :, start:start + s]
        r, c = linear_sum_assignment(cm)
        sel = cm[r, c] < 1e9
        indices.append((r[sel].astype(np.int64), c[sel].astype(np.int64)))
        start += s
    return indices, C


def _reference_cost(boxes_flat, offsets, kp_flat, conf_flat,
                    tgt_boxes, tgt_kp, anchor, w):
    """Pure-numpy reference of the cost matrix for a correctness check."""
    bx = np.asarray(boxes_flat); off = np.asarray(offsets)
    kp = np.asarray(kp_flat); conf = np.asarray(conf_flat)
    px = bx[:, 0:1] + off[:, 0:1]
    py = bx[:, 1:2] + off[:, 1:2]
    pw = np.exp(bx[:, 3:4]) * anchor[0]
    ph = np.exp(bx[:, 4:5]) * anchor[1]
    pbox = np.concatenate([px, py, pw, ph], axis=-1)                # (M, 4)
    cost_box = np.abs(pbox[:, None, :] - tgt_boxes[None]).sum(-1)
    cost_kp = np.abs(kp[:, None, :] - tgt_kp[None]).sum(-1)
    p_xyxy = np.concatenate([px - pw / 2, py - ph / 2,
                             px + pw / 2, py + ph / 2], -1)
    t_xyxy = np.stack([tgt_boxes[:, 0] - tgt_boxes[:, 2] / 2,
                       tgt_boxes[:, 1] - tgt_boxes[:, 3] / 2,
                       tgt_boxes[:, 0] + tgt_boxes[:, 2] / 2,
                       tgt_boxes[:, 1] + tgt_boxes[:, 3] / 2], -1)
    iw = np.clip(np.minimum(p_xyxy[:, None, 2], t_xyxy[None, :, 2])
                 - np.maximum(p_xyxy[:, None, 0], t_xyxy[None, :, 0]), 0, None)
    ih = np.clip(np.minimum(p_xyxy[:, None, 3], t_xyxy[None, :, 3])
                 - np.maximum(p_xyxy[:, None, 1], t_xyxy[None, :, 1]), 0, None)
    inter = iw * ih
    union = (pw * ph) + (tgt_boxes[:, 2] * tgt_boxes[:, 3])[None] - inter
    iou = inter / union
    return (w[1] * cost_kp + w[2] * (-iou) + w[3] * (-conf) + w[0] * cost_box)


if __name__ == "__main__":
    B, G, K = 2, 8, 6          # keypoints = 2 points x 3 coords
    anchor = (3.0, 3.0)
    key = jax.random.PRNGKey(0)
    k1, k2, k3, k4, k5 = jax.random.split(key, 5)

    outputs = {
        'pred_boxes': jax.random.normal(k1, (B, G, G, 6), jnp.float32) * 0.5,
        'pred_keypoints': jax.random.normal(k2, (B, G, G, K), jnp.float32),
        'pred_confidence': jax.random.uniform(k3, (B, G, G, 1), jnp.float32),
    }
    sizes = [3, 5]
    targets = {
        'boxes': [np.asarray(jax.random.uniform(k4, (s, 2, 3), jnp.float32))
                  for s in sizes],
        'keypoints': [np.asarray(jax.random.uniform(k5, (s, 2, 3), jnp.float32))
                      for s in sizes],
    }

    indices, C = hungarian_matcher_forward(outputs, targets, anchor,
                                           cost_boxes=1.0, cost_keypoint=1.0,
                                           cost_giou=1.0, cost_obj=1.0,
                                           iou_thresh=None)

    # second call exercises the jit/lru cache (no retrace)
    indices2, C2 = hungarian_matcher_forward(outputs, targets, anchor)

    # correctness check of the Pallas-computed cost matrix vs numpy reference
    M = B * G * G
    off_x = np.broadcast_to(np.arange(G, dtype=np.float32)[None, :], (G, G))
    off_y = np.broadcast_to(np.arange(G, dtype=np.float32)[:, None], (G, G))
    offsets = np.broadcast_to(np.stack([off_x, off_y], -1)[None],
                              (B, G, G, 2)).reshape(M, 2)
    tb_np = np.concatenate(targets['boxes'], 0)
    tk_np = np.concatenate(targets['keypoints'], 0)
    N = tb_np.shape[0]
    tgt_boxes = tb_np.reshape(N, -1)[:, [0, 1, 3, 4]].astype(np.float32) * G
    tgt_kp = tk_np.reshape(N, -1).astype(np.float32)
    C_ref = _reference_cost(np.asarray(outputs['pred_boxes']).reshape(M, 6),
                            offsets,
                            np.asarray(outputs['pred_keypoints']).reshape(M, K),
                            np.asarray(outputs['pred_confidence']).reshape(M, 1),
                            tgt_boxes, tgt_kp, anchor,
                            (1.0, 1.0, 1.0, 1.0)).reshape(B, G * G, N)
    np.testing.assert_allclose(C, C_ref, rtol=1e-4, atol=1e-4)
    np.testing.assert_allclose(C2, C_ref, rtol=1e-4, atol=1e-4)

    for i, (r, c) in enumerate(indices):
        assert r.shape == c.shape and r.dtype == np.int64
    print("KERNEL_OK")
</pallas_src>

<mosaic_0001>
module attributes {stable_mosaic.version = 11 : i64} {
  func.func @kernel(%arg0: i32, %arg1: memref<64x16xf32, #tpu.memory_space<vmem>>, %arg2: memref<15x128xf32, #tpu.memory_space<vmem>>, %arg3: memref<64x128xf32, #tpu.memory_space<vmem>>) attributes {dimension_semantics = [#tpu.dimension_semantics<parallel>], iteration_bounds = array<i64: 2>, scalar_prefetch = 0 : i64, scratch_operands = 0 : i64, tpu.core_type = #tpu.core_type<tc>, window_params = [{transform_indices = @transform_0, window_bounds = array<i64: 64, 16>}, {pipeline_mode = #tpu.pipeline_mode<synchronous>, transform_indices = @transform_1, window_bounds = array<i64: 15, 128>}, {transform_indices = @transform_2, window_bounds = array<i64: 64, 128>}]} {
    %c0 = arith.constant 0 : index
    %c0_0 = arith.constant 0 : index
    %0 = vector.load %arg1[%c0, %c0_0] : memref<64x16xf32, #tpu.memory_space<vmem>>, vector<64x16xf32>
    %c0_1 = arith.constant 0 : index
    %c0_2 = arith.constant 0 : index
    %1 = vector.load %arg2[%c0_1, %c0_2] : memref<15x128xf32, #tpu.memory_space<vmem>>, vector<15x128xf32>
    %2 = vector.extract_strided_slice %0 {offsets = [0, 0], sizes = [64, 1], strides = [1, 1]} : vector<64x16xf32> to vector<64x1xf32>
    %3 = vector.extract_strided_slice %0 {offsets = [0, 1], sizes = [64, 1], strides = [1, 1]} : vector<64x16xf32> to vector<64x1xf32>
    %4 = vector.extract_strided_slice %0 {offsets = [0, 2], sizes = [64, 1], strides = [1, 1]} : vector<64x16xf32> to vector<64x1xf32>
    %5 = vector.extract_strided_slice %0 {offsets = [0, 3], sizes = [64, 1], strides = [1, 1]} : vector<64x16xf32> to vector<64x1xf32>
    %6 = vector.extract_strided_slice %0 {offsets = [0, 4], sizes = [64, 1], strides = [1, 1]} : vector<64x16xf32> to vector<64x1xf32>
    %7 = vector.extract_strided_slice %0 {offsets = [0, 5], sizes = [64, 1], strides = [1, 1]} : vector<64x16xf32> to vector<64x1xf32>
    %8 = vector.extract_strided_slice %0 {offsets = [0, 6], sizes = [64, 1], strides = [1, 1]} : vector<64x16xf32> to vector<64x1xf32>
    %9 = vector.extract_strided_slice %0 {offsets = [0, 7], sizes = [64, 1], strides = [1, 1]} : vector<64x16xf32> to vector<64x1xf32>
    %10 = vector.extract_strided_slice %0 {offsets = [0, 8], sizes = [64, 1], strides = [1, 1]} : vector<64x16xf32> to vector<64x1xf32>
    %11 = vector.extract_strided_slice %0 {offsets = [0, 9], sizes = [64, 1], strides = [1, 1]} : vector<64x16xf32> to vector<64x1xf32>
    %12 = vector.extract_strided_slice %1 {offsets = [0, 0], sizes = [1, 128], strides = [1, 1]} : vector<15x128xf32> to vector<1x128xf32>
    %13 = vector.extract_strided_slice %1 {offsets = [1, 0], sizes = [1, 128], strides = [1, 1]} : vector<15x128xf32> to vector<1x128xf32>
    %14 = vector.extract_strided_slice %1 {offsets = [2, 0], sizes = [1, 128], strides = [1, 1]} : vector<15x128xf32> to vector<1x128xf32>
    %15 = vector.extract_strided_slice %1 {offsets = [3, 0], sizes = [1, 128], strides = [1, 1]} : vector<15x128xf32> to vector<1x128xf32>
    %16 = vector.extract_strided_slice %1 {offsets = [4, 0], sizes = [1, 128], strides = [1, 1]} : vector<15x128xf32> to vector<1x128xf32>
    %17 = vector.extract_strided_slice %1 {offsets = [5, 0], sizes = [1, 128], strides = [1, 1]} : vector<15x128xf32> to vector<1x128xf32>
    %18 = vector.extract_strided_slice %1 {offsets = [6, 0], sizes = [1, 128], strides = [1, 1]} : vector<15x128xf32> to vector<1x128xf32>
    %19 = vector.extract_strided_slice %1 {offsets = [7, 0], sizes = [1, 128], strides = [1, 1]} : vector<15x128xf32> to vector<1x128xf32>
    %20 = vector.extract_strided_slice %1 {offsets = [8, 0], sizes = [1, 128], strides = [1, 1]} : vector<15x128xf32> to vector<1x128xf32>
    %21 = vector.broadcast %2 : vector<64x1xf32> to vector<64x128xf32>
    %22 = vector.broadcast %12 : vector<1x128xf32> to vector<64x128xf32>
    %23 = arith.subf %21, %22 : vector<64x128xf32>
    %24 = math.absf %23 : vector<64x128xf32>
    %25 = vector.broadcast %3 : vector<64x1xf32> to vector<64x128xf32>
    %26 = vector.broadcast %13 : vector<1x128xf32> to vector<64x128xf32>
    %27 = arith.subf %25, %26 : vector<64x128xf32>
    %28 = math.absf %27 : vector<64x128xf32>
    %29 = arith.addf %24, %28 : vector<64x128xf32>
    %30 = vector.broadcast %4 : vector<64x1xf32> to vector<64x128xf32>
    %31 = vector.broadcast %14 : vector<1x128xf32> to vector<64x128xf32>
    %32 = arith.subf %30, %31 : vector<64x128xf32>
    %33 = math.absf %32 : vector<64x128xf32>
    %34 = arith.addf %29, %33 : vector<64x128xf32>
    %35 = vector.broadcast %5 : vector<64x1xf32> to vector<64x128xf32>
    %36 = vector.broadcast %15 : vector<1x128xf32> to vector<64x128xf32>
    %37 = arith.subf %35, %36 : vector<64x128xf32>
    %38 = math.absf %37 : vector<64x128xf32>
    %39 = arith.addf %34, %38 : vector<64x128xf32>
    %40 = vector.extract_strided_slice %0 {offsets = [0, 10], sizes = [64, 1], strides = [1, 1]} : vector<64x16xf32> to vector<64x1xf32>
    %41 = vector.extract_strided_slice %1 {offsets = [9, 0], sizes = [1, 128], strides = [1, 1]} : vector<15x128xf32> to vector<1x128xf32>
    %42 = vector.broadcast %40 : vector<64x1xf32> to vector<64x128xf32>
    %43 = vector.broadcast %41 : vector<1x128xf32> to vector<64x128xf32>
    %44 = arith.subf %42, %43 : vector<64x128xf32>
    %45 = math.absf %44 : vector<64x128xf32>
    %46 = vector.extract_strided_slice %0 {offsets = [0, 11], sizes = [64, 1], strides = [1, 1]} : vector<64x16xf32> to vector<64x1xf32>
    %47 = vector.extract_strided_slice %1 {offsets = [10, 0], sizes = [1, 128], strides = [1, 1]} : vector<15x128xf32> to vector<1x128xf32>
    %48 = vector.broadcast %46 : vector<64x1xf32> to vector<64x128xf32>
    %49 = vector.broadcast %47 : vector<1x128xf32> to vector<64x128xf32>
    %50 = arith.subf %48, %49 : vector<64x128xf32>
    %51 = math.absf %50 : vector<64x128xf32>
    %52 = arith.addf %45, %51 : vector<64x128xf32>
    %53 = vector.extract_strided_slice %0 {offsets = [0, 12], sizes = [64, 1], strides = [1, 1]} : vector<64x16xf32> to vector<64x1xf32>
    %54 = vector.extract_strided_slice %1 {offsets = [11, 0], sizes = [1, 128], strides = [1, 1]} : vector<15x128xf32> to vector<1x128xf32>
    %55 = vector.broadcast %53 : vector<64x1xf32> to vector<64x128xf32>
    %56 = vector.broadcast %54 : vector<1x128xf32> to vector<64x128xf32>
    %57 = arith.subf %55, %56 : vector<64x128xf32>
    %58 = math.absf %57 : vector<64x128xf32>
    %59 = arith.addf %52, %58 : vector<64x128xf32>
    %60 = vector.extract_strided_slice %0 {offsets = [0, 13], sizes = [64, 1], strides = [1, 1]} : vector<64x16xf32> to vector<64x1xf32>
    %61 = vector.extract_strided_slice %1 {offsets = [12, 0], sizes = [1, 128], strides = [1, 1]} : vector<15x128xf32> to vector<1x128xf32>
    %62 = vector.broadcast %60 : vector<64x1xf32> to vector<64x128xf32>
    %63 = vector.broadcast %61 : vector<1x128xf32> to vector<64x128xf32>
    %64 = arith.subf %62, %63 : vector<64x128xf32>
    %65 = math.absf %64 : vector<64x128xf32>
    %66 = arith.addf %59, %65 : vector<64x128xf32>
    %67 = vector.extract_strided_slice %0 {offsets = [0, 14], sizes = [64, 1], strides = [1, 1]} : vector<64x16xf32> to vector<64x1xf32>
    %68 = vector.extract_strided_slice %1 {offsets = [13, 0], sizes = [1, 128], strides = [1, 1]} : vector<15x128xf32> to vector<1x128xf32>
    %69 = vector.broadcast %67 : vector<64x1xf32> to vector<64x128xf32>
    %70 = vector.broadcast %68 : vector<1x128xf32> to vector<64x128xf32>
    %71 = arith.subf %69, %70 : vector<64x128xf32>
    %72 = math.absf %71 : vector<64x128xf32>
    %73 = arith.addf %66, %72 : vector<64x128xf32>
    %74 = vector.extract_strided_slice %0 {offsets = [0, 15], sizes = [64, 1], strides = [1, 1]} : vector<64x16xf32> to vector<64x1xf32>
    %75 = vector.extract_strided_slice %1 {offsets = [14, 0], sizes = [1, 128], strides = [1, 1]} : vector<15x128xf32> to vector<1x128xf32>
    %76 = vector.broadcast %74 : vector<64x1xf32> to vector<64x128xf32>
    %77 = vector.broadcast %75 : vector<1x128xf32> to vector<64x128xf32>
    %78 = arith.subf %76, %77 : vector<64x128xf32>
    %79 = math.absf %78 : vector<64x128xf32>
    %80 = arith.addf %73, %79 : vector<64x128xf32>
    %81 = vector.broadcast %7 : vector<64x1xf32> to vector<64x128xf32>
    %82 = vector.broadcast %17 : vector<1x128xf32> to vector<64x128xf32>
    %83 = arith.minimumf %81, %82 : vector<64x128xf32>
    %84 = vector.broadcast %6 : vector<64x1xf32> to vector<64x128xf32>
    %85 = vector.broadcast %16 : vector<1x128xf32> to vector<64x128xf32>
    %86 = arith.maximumf %84, %85 : vector<64x128xf32>
    %87 = arith.subf %83, %86 : vector<64x128xf32>
    %cst = arith.constant 0.000000e+00 : f32
    %88 = vector.broadcast %cst : f32 to vector<64x128xf32>
    %89 = arith.maximumf %87, %88 : vector<64x128xf32>
    %90 = vector.broadcast %9 : vector<64x1xf32> to vector<64x128xf32>
    %91 = vector.broadcast %19 : vector<1x128xf32> to vector<64x128xf32>
    %92 = arith.minimumf %90, %91 : vector<64x128xf32>
    %93 = vector.broadcast %8 : vector<64x1xf32> to vector<64x128xf32>
    %94 = vector.broadcast %18 : vector<1x128xf32> to vector<64x128xf32>
    %95 = arith.maximumf %93, %94 : vector<64x128xf32>
    %96 = arith.subf %92, %95 : vector<64x128xf32>
    %cst_3 = arith.constant 0.000000e+00 : f32
    %97 = vector.broadcast %cst_3 : f32 to vector<64x128xf32>
    %98 = arith.maximumf %96, %97 : vector<64x128xf32>
    %99 = arith.mulf %89, %98 : vector<64x128xf32>
    %100 = vector.broadcast %10 : vector<64x1xf32> to vector<64x128xf32>
    %101 = vector.broadcast %20 : vector<1x128xf32> to vector<64x128xf32>
    %102 = arith.addf %100, %101 : vector<64x128xf32>
    %103 = arith.subf %102, %99 : vector<64x128xf32>
    %cst_4 = arith.constant 9.99999971E-10 : f32
    %104 = vector.broadcast %cst_4 : f32 to vector<64x128xf32>
    %105 = arith.addf %103, %104 : vector<64x128xf32>
    %106 = tpu.reciprocal %105 : vector<64x128xf32> -> vector<64x128xf32>
    %107 = arith.mulf %99, %106 : vector<64x128xf32>
    %cst_5 = arith.constant 1.000000e+00 : f32
    %108 = vector.broadcast %cst_5 : f32 to vector<64x128xf32>
    %109 = arith.mulf %108, %80 : vector<64x128xf32>
    %cst_6 = arith.constant 1.000000e+00 : f32
    %110 = vector.broadcast %cst_6 : f32 to vector<64x128xf32>
    %111 = arith.mulf %110, %39 : vector<64x128xf32>
    %112 = arith.addf %109, %111 : vector<64x128xf32>
    %cst_7 = arith.constant 1.000000e+00 : f32
    %113 = vector.broadcast %cst_7 : f32 to vector<64x128xf32>
    %114 = arith.mulf %113, %107 : vector<64x128xf32>
    %115 = arith.subf %112, %114 : vector<64x128xf32>
    %116 = vector.broadcast %11 : vector<64x1xf32> to vector<64x128xf32>
    %117 = arith.addf %115, %116 : vector<64x128xf32>
    %c0_8 = arith.constant 0 : index
    %c0_9 = arith.constant 0 : index
    %118 = vector.load %arg3[%c0_8, %c0_9] : memref<64x128xf32, #tpu.memory_space<vmem>>, vector<64x128xf32>
    tpu.vector_store %arg3[%c0_8, %c0_9], %117 {strides = array<i32>} : memref<64x128xf32, #tpu.memory_space<vmem>>, vector<64x128xf32>,
    return
  }
  func.func @transform_0(%arg0: i32) -> (i32, i32) {
    %c0_i32 = arith.constant 0 : i32
    %c0_i32_0 = arith.constant 0 : i32
    return %arg0, %c0_i32 : i32, i32
  }
  func.func @transform_1(%arg0: i32) -> (i32, i32) {
    %c0_i32 = arith.constant 0 : i32
    %c0_i32_0 = arith.constant 0 : i32
    %c0_i32_1 = arith.constant 0 : i32
    return %c0_i32, %c0_i32_0 : i32, i32
  }
  func.func @transform_2(%arg0: i32) -> (i32, i32) {
    %c0_i32 = arith.constant 0 : i32
    %c0_i32_0 = arith.constant 0 : i32
    return %arg0, %c0_i32 : i32, i32
  }
}

</mosaic_0001>

<llo_original>
// kernel: mul.21
$region0: #{mul.21}
  #allocation0 [shape = 's32[1]{0}', space=sflag, size = 0x4, scoped, tag = 'scoped memory for mul.21']
  %s0 = inlined_call_operand.vmem [shape: f32[128,1], index: 0, kind: input, shape index: {}]
  %s1 = inlined_call_operand.vmem [shape: f32[128,1], index: 1, kind: input, shape index: {}]
  %s2 = inlined_call_operand.vmem [shape: f32[128,1], index: 2, kind: output, shape index: {}]
  %v3 = vld [vmem:[%s0] sm:$0x1]
  %v4 = vld [vmem:[%s1] sm:$0x1]
  %5 = xla_tuple %v3, %v4
  %6 = xla_tuple %5
  %v7 = vmul.f32 %v3, %v4
  %8 = xla_tuple %v7
  %9 = vst [vmem:[%s2] sm:$0x1] %v7

// kernel: sub.5
$region0: #{sub.5}
  #allocation0 [shape = 's32[1]{0}', space=sflag, size = 0x4, scoped, tag = 'scoped memory for sub.5']
  %s0 = inlined_call_operand.vmem [shape: f32[128,1], index: 0, kind: input, shape index: {}]
  %s1 = inlined_call_operand.vmem [shape: f32[128,1], index: 1, kind: input, shape index: {}]
  %s2 = inlined_call_operand.vmem [shape: f32[128,1], index: 2, kind: output, shape index: {}]
  %v3 = vld [vmem:[%s0] sm:$0x1]
  %v4 = vld [vmem:[%s1] sm:$0x1]
  %5 = xla_tuple %v3, %v4
  %6 = xla_tuple %5
  %v7 = vsub.f32 %v3, %v4
  %8 = xla_tuple %v7
  %9 = vst [vmem:[%s2] sm:$0x1] %v7

// kernel: fwd.1
$region0: #{fwd.1}
  #allocation0 [shape = 'u32[]', space=smem, size = 0x4, offset = 0x4, fixed_abs, tag = 'smem constant byte address 0x4 - core index']
  #allocation1 [shape = 'u32[72,128]{1,0:T(1,128)}', space=vmem, size = 0x9000, scoped, tag = 'internal scratch']
  %s0 = inlined_call_operand.vmem [shape: f32[128,16], index: 0, kind: input, shape index: {}]
  %s1 = inlined_call_operand.vmem [shape: f32[15,128], index: 1, kind: input, shape index: {}]
  %s2 = inlined_call_operand.vmem [shape: f32[128,128], index: 2, kind: output, shape index: {}]
  %s3 = sld [smem:[#allocation0]]
  $region41: #{fwd.1} parent=0
    _
  %s5 = ssub.s32 1, %s3
  %s6 = scalar_select 0, %s5, %s3
  loop: start=0, step=1, limit=4
  $region2: #{fwd.1} parent=0 // loop_pre_header
    _
  $region3: #{fwd.1} parent=0 // loop_header
    %s8 = sphi 0, %s12
    %p9 = scmp.ge.s32.totalorder %s8, 4
    %s18 = sphi 0, %s20
    %s21 = sphi 0, %s18
    %s22 = sphi 0, %s21
    %s38 = sphi 0, %s22
    %s42 = sphi 0, %s42
    %s44 = sphi 0, %s42
    %s45 = sphi 0, %s44
    %s59 = sphi 0, %s45
    %s65 = sphi 0, %s67
    %s68 = sphi 0, %s65
    %s69 = sphi 0, %s68
    %s85 = sphi 0, %s69
  $region4: #{fwd.1} parent=0 // loop_header_branch
    %11 = sbr.rel (%p9) target = $region8
  $region5: #{fwd.1} parent=0 // loop_body
    %s13 = ssub.s32 %s8, 1
    %s14 = ssub.s32 %s8, 2
    %s15 = sadd.s32 %s8, 1
    %s16 = ssub.s32 %s8, %s15
    %p17 = scmp.eq.s32.totalorder %s16, 0
    %s19 = sadd.s32 %s18, 1
    %s20 = scalar_select %p17, %s18, %s19
    %p23 = pneg %p17
    %p24 = scmp.eq.s32.totalorder %s8, 1
    %p25 = por %p23, %p24
    %p26 = scmp.ne.s32.totalorder %s18, %s21
    %p27 = scmp.eq.s32.totalorder %s8, 0
    %p28 = por %p26, %p27
    %p29 = scmp.ne.s32.totalorder %s18, %s21
    %p30 = scmp.eq.s32.totalorder %s13, 1
    %p31 = por %p29, %p30
    %p32 = scmp.ne.s32.totalorder %s21, %s22
    %p33 = scmp.eq.s32.totalorder %s13, 0
    %p34 = por %p32, %p33
    %p35 = scmp.ne.s32.totalorder %s21, %s22
    %p36 = scmp.eq.s32.totalorder %s14, 1
    %p37 = por %p35, %p36
    %p39 = scmp.ne.s32.totalorder %s22, %s38
    %p40 = scmp.eq.s32.totalorder %s14, 0
    %p41 = por %p39, %p40
    %s43 = sadd.s32 %s42, 1
    %p46 = scmp.eq.s32.totalorder %s8, 1
    %p47 = scmp.ne.s32.totalorder %s42, %s44
    %p48 = scmp.eq.s32.totalorder %s8, 0
    %p49 = por %p47, %p48
    %p50 = scmp.ne.s32.totalorder %s42, %s44
    %p51 = scmp.eq.s32.totalorder %s13, 1
    %p52 = por %p50, %p51
    %p53 = scmp.ne.s32.totalorder %s44, %s45
    %p54 = scmp.eq.s32.totalorder %s13, 0
    %p55 = por %p53, %p54
    %p56 = scmp.ne.s32.totalorder %s44, %s45
    %p57 = scmp.eq.s32.totalorder %s14, 1
    %p58 = por %p56, %p57
    %p60 = scmp.ne.s32.totalorder %s45, %s59
    %p61 = scmp.eq.s32.totalorder %s14, 0
    %p62 = por %p60, %p61
    %s63 = ssub.s32 %s8, %s15
    %p64 = scmp.eq.s32.totalorder %s63, 0
    %s66 = sadd.s32 %s65, 1
    %s67 = scalar_select %p64, %s65, %s66
    %p70 = pneg %p64
    %p71 = scmp.eq.s32.totalorder %s8, 1
    %p72 = por %p70, %p71
    %p73 = scmp.ne.s32.totalorder %s65, %s68
    %p74 = scmp.eq.s32.totalorder %s8, 0
    %p75 = por %p73, %p74
    %p76 = scmp.ne.s32.totalorder %s65, %s68
    %p77 = scmp.eq.s32.totalorder %s13, 1
    %p78 = por %p76, %p77
    %p79 = scmp.ne.s32.totalorder %s68, %s69
    %p80 = scmp.eq.s32.totalorder %s13, 0
    %p81 = por %p79, %p80
    %p82 = scmp.ne.s32.totalorder %s68, %s69
    %p83 = scmp.eq.s32.totalorder %s14, 1
    %p84 = por %p82, %p83
    %p86 = scmp.ne.s32.totalorder %s69, %s85
    %p87 = scmp.eq.s32.totalorder %s14, 0
    %p88 = por %p86, %p87
    %p89 = scmp.le.s32.totalorder 1, %s8
    %p90 = scmp.lt.s32.totalorder %s8, 3
    %p91 = pnand %p89, %p90
    %p92 = pneg %p91
    // Predicated region
    $region9: #{fwd.1} parent=5 // pred_check
      _
    $region10: #{fwd.1} parent=5 // pred_check_branch
      %94 = sbr.rel (%p91) target = $region12
    $region11: #{fwd.1} parent=5 // pred_region
      %s95 = ssub.s32 %s8, 1
      // Predicated region
      $region13: #{fwd.1} parent=11 // pred_check
        %p96 = pneg %p55
      $region14: #{fwd.1} parent=11 // pred_check_branch
        %98 = sbr.rel (%p96) target = $region16
      $region15: #{fwd.1} parent=11 // pred_region
        _
      $region16: #{fwd.1} parent=11 // pred_fallthru
        _
    $region12: #{fwd.1} parent=5 // pred_fallthru
      _
    %p99 = scmp.lt.s32.totalorder %s8, 2
    // Predicated region
    $region17: #{fwd.1} parent=5 // pred_check
      %p100 = pneg %p99
    $region18: #{fwd.1} parent=5 // pred_check_branch
      %102 = sbr.rel (%p100) target = $region20
    $region19: #{fwd.1} parent=5 // pred_region
      // Predicated region
      $region21: #{fwd.1} parent=19 // pred_check
        %p103 = pneg %p28
      $region22: #{fwd.1} parent=19 // pred_check_branch
        %105 = sbr.rel (%p103) target = $region24
      $region23: #{fwd.1} parent=19 // pred_region
        %s106 = smul.u32 8, %s8
        %p107 = scmp.lt.s32.totalorder %s106, 15
        %s108 = scalar_select %p107, %s106, 15
        %s109 = smul.addr %s108, 8
        %s110 = scalar_lea.vmem %s0, %s109
        %s111 = smul.u32 8, %s8
      $region24: #{fwd.1} parent=19 // pred_fallthru
        _
    $region20: #{fwd.1} parent=5 // pred_fallthru
      _
    %p112 = scmp.le.s32.totalorder 1, %s8
    %p113 = scmp.lt.s32.totalorder %s8, 3
    %p114 = pnand %p112, %p113
    %p115 = pneg %p114
    // Predicated region
    $region25: #{fwd.1} parent=5 // pred_check
      _
    $region26: #{fwd.1} parent=5 // pred_check_branch
      %117 = sbr.rel (%p114) target = $region28
    $region27: #{fwd.1} parent=5 // pred_region
      %s118 = ssub.s32 %s8, 1
      %s119 = smul.u32 8, %s13
      %p120 = scmp.lt.s32.totalorder %s119, 15
      %s121 = scalar_select %p120, %s119, 15
      %s122 = smul.addr %s121, 8
      %s123 = scalar_lea.vmem %s0, %s122
      %p124 = pneg %p34
      %p125 = pneg %p31
      %p126 = pneg %p55
      %p127 = pneg %p52
      %p128 = pneg %p81
      %p129 = pneg %p78
      %s130 = smul.u32 8, %s13
      %p131 = scmp.lt.s32.totalorder %s130, 15
      %s132 = scalar_select %p131, %s130, 15
      %s133 = smul.addr %s132, 8
      %s134 = scalar_lea.vmem %s2, %s133
      %s135 = smul.u32 8, %s13
      %p136 = scmp.lt.s32.totalorder %s135, 15
      %s137 = scalar_select %p136, %s135, 15
      %s138 = smul.addr %s137, 8
      %s139 = scalar_lea.vmem %s0, %s138
      %s140 = smul.u32 8, %s13
      %s141 = smul.u32 8, %s13
      %p142 = scmp.lt.s32.totalorder %s141, 15
      %s143 = scalar_select %p142, %s141, 15
      %s144 = smul.addr %s143, 8
      %s145 = scalar_lea.vmem %s2, %s144
      %s146 = smul.u32 8, %s13
      %v147 = vld [vmem:[%s139] sm:$0xff]
      %v148 = vld [vmem:[%s139 + $0x8] sm:$0xff]
      %v149 = vld [vmem:[%s139 + $0x10] sm:$0xff]
      %v150 = vld [vmem:[%s139 + $0x18] sm:$0xff]
      %v151 = vld [vmem:[%s139 + $0x20] sm:$0xff]
      %v152 = vld [vmem:[%s139 + $0x28] sm:$0xff]
      %v153 = vld [vmem:[%s139 + $0x30] sm:$0xff]
      %v154 = vld [vmem:[%s139 + $0x38] sm:$0xff]
      %v155 = vld [vmem:[%s1] sm:$0xff]
      %v156 = vld [vmem:[%s1 + $0x8] sm:$0x7f]
      %158 = vset.pattern.permute.xlu0 0
      %159 = vperm.xlu0 %158, %v147
      %v160 = vpop.permute.xlu0 %159
      %163 = vset.pattern.permute.xlu0 0
      %164 = vperm.xlu0 %163, %v148
      %v165 = vpop.permute.xlu0 %164
      %168 = vset.pattern.permute.xlu0 0
      %169 = vperm.xlu0 %168, %v149
      %v170 = vpop.permute.xlu0 %169
      %173 = vset.pattern.permute.xlu0 0
      %174 = vperm.xlu0 %173, %v150
      %v175 = vpop.permute.xlu0 %174
      %178 = vset.pattern.permute.xlu0 0
      %179 = vperm.xlu0 %178, %v151
      %v180 = vpop.permute.xlu0 %179
      %183 = vset.pattern.permute.xlu0 0
      %184 = vperm.xlu0 %183, %v152
      %v185 = vpop.permute.xlu0 %184
      %188 = vset.pattern.permute.xlu0 0
      %189 = vperm.xlu0 %188, %v153
      %v190 = vpop.permute.xlu0 %189
      %193 = vset.pattern.permute.xlu0 0
      %194 = vperm.xlu0 %193, %v154
      %v195 = vpop.permute.xlu0 %194
      %v197 = vperm.slane %v155, 0
      %v198 = vsub.f32 %v160, %v197
      %v199 = vsub.f32 %v165, %v197
      %v200 = vsub.f32 %v170, %v197
      %v201 = vsub.f32 %v175, %v197
      %v202 = vsub.f32 %v180, %v197
      %v203 = vsub.f32 %v185, %v197
      %v204 = vsub.f32 %v190, %v197
      %v205 = vsub.f32 %v195, %v197
      %v206 = vand.u32 2147483647, %v198
      %v207 = vand.u32 2147483647, %v199
      %v208 = vand.u32 2147483647, %v200
      %v209 = vand.u32 2147483647, %v201
      %v210 = vand.u32 2147483647, %v202
      %v211 = vand.u32 2147483647, %v203
      %v212 = vand.u32 2147483647, %v204
      %v213 = vand.u32 2147483647, %v205
      %214 = vset.pattern.permute.xlu0 1
      %215 = vperm.xlu0 %214, %v147
      %v216 = vpop.permute.xlu0 %215
      %218 = vset.pattern.permute.xlu0 1
      %219 = vperm.xlu0 %218, %v148
      %v220 = vpop.permute.xlu0 %219
      %222 = vset.pattern.permute.xlu0 1
      %223 = vperm.xlu0 %222, %v149
      %v224 = vpop.permute.xlu0 %223
      %226 = vset.pattern.permute.xlu0 1
      %227 = vperm.xlu0 %226, %v150
      %v228 = vpop.permute.xlu0 %227
      %230 = vset.pattern.permute.xlu0 1
      %231 = vperm.xlu0 %230, %v151
      %v232 = vpop.permute.xlu0 %231
      %234 = vset.pattern.permute.xlu0 1
      %235 = vperm.xlu0 %234, %v152
      %v236 = vpop.permute.xlu0 %235
      %238 = vset.pattern.permute.xlu0 1
      %239 = vperm.xlu0 %238, %v153
      %v240 = vpop.permute.xlu0 %239
      %242 = vset.pattern.permute.xlu0 1
      %243 = vperm.xlu0 %242, %v154
      %v244 = vpop.permute.xlu0 %243
      %v246 = vperm.slane %v155, 1
      %v247 = vsub.f32 %v216, %v246
      %v248 = vsub.f32 %v220, %v246
      %v249 = vsub.f32 %v224, %v246
      %v250 = vsub.f32 %v228, %v246
      %v251 = vsub.f32 %v232, %v246
      %v252 = vsub.f32 %v236, %v246
      %v253 = vsub.f32 %v240, %v246
      %v254 = vsub.f32 %v244, %v246
      %v255 = vand.u32 2147483647, %v247
      %v256 = vand.u32 2147483647, %v248
      %v257 = vand.u32 2147483647, %v249
      %v258 = vand.u32 2147483647, %v250
      %v259 = vand.u32 2147483647, %v251
      %v260 = vand.u32 2147483647, %v252
      %v261 = vand.u32 2147483647, %v253
      %v262 = vand.u32 2147483647, %v254
      %v263 = vadd.f32 %v206, %v255
      %v264 = vadd.f32 %v207, %v256
      %v265 = vadd.f32 %v208, %v257
      %v266 = vadd.f32 %v209, %v258
      %v267 = vadd.f32 %v210, %v259
      %v268 = vadd.f32 %v211, %v260
      %v269 = vadd.f32 %v212, %v261
      %v270 = vadd.f32 %v213, %v262
      %271 = vset.pattern.permute.xlu0 2
      %272 = vperm.xlu0 %271, %v147
      %v273 = vpop.permute.xlu0 %272
      %275 = vset.pattern.permute.xlu0 2
      %276 = vperm.xlu0 %275, %v148
      %v277 = vpop.permute.xlu0 %276
      %279 = vset.pattern.permute.xlu0 2
      %280 = vperm.xlu0 %279, %v149
      %v281 = vpop.permute.xlu0 %280
      %283 = vset.pattern.permute.xlu0 2
      %284 = vperm.xlu0 %283, %v150
      %v285 = vpop.permute.xlu0 %284
      %287 = vset.pattern.permute.xlu0 2
      %288 = vperm.xlu0 %287, %v151
      %v289 = vpop.permute.xlu0 %288
      %291 = vset.pattern.permute.xlu0 2
      %292 = vperm.xlu0 %291, %v152
      %v293 = vpop.permute.xlu0 %292
      %295 = vset.pattern.permute.xlu0 2
      %296 = vperm.xlu0 %295, %v153
      %v297 = vpop.permute.xlu0 %296
      %299 = vset.pattern.permute.xlu0 2
      %300 = vperm.xlu0 %299, %v154
      %v301 = vpop.permute.xlu0 %300
      %v303 = vperm.slane %v155, 2
      %v304 = vsub.f32 %v273, %v303
      %v305 = vsub.f32 %v277, %v303
      %v306 = vsub.f32 %v281, %v303
      %v307 = vsub.f32 %v285, %v303
      %v308 = vsub.f32 %v289, %v303
      %v309 = vsub.f32 %v293, %v303
      %v310 = vsub.f32 %v297, %v303
      %v311 = vsub.f32 %v301, %v303
      %v312 = vand.u32 2147483647, %v304
      %v313 = vand.u32 2147483647, %v305
      %v314 = vand.u32 2147483647, %v306
      %v315 = vand.u32 2147483647, %v307
      %v316 = vand.u32 2147483647, %v308
      %v317 = vand.u32 2147483647, %v309
      %v318 = vand.u32 2147483647, %v310
      %v319 = vand.u32 2147483647, %v311
      %v320 = vadd.f32 %v263, %v312
      %v321 = vadd.f32 %v264, %v313
      %v322 = vadd.f32 %v265, %v314
      %v323 = vadd.f32 %v266, %v315
      %v324 = vadd.f32 %v267, %v316
      %v325 = vadd.f32 %v268, %v317
      %v326 = vadd.f32 %v269, %v318
      %v327 = vadd.f32 %v270, %v319
      %328 = vset.pattern.permute.xlu0 3
      %329 = vperm.xlu0 %328, %v147
      %v330 = vpop.permute.xlu0 %329
      %332 = vset.pattern.permute.xlu0 3
      %333 = vperm.xlu0 %332, %v148
      %v334 = vpop.permute.xlu0 %333
      %336 = vset.pattern.permute.xlu0 3
      %337 = vperm.xlu0 %336, %v149
      %v338 = vpop.permute.xlu0 %337
      %340 = vset.pattern.permute.xlu0 3
      %341 = vperm.xlu0 %340, %v150
      %v342 = vpop.permute.xlu0 %341
      %344 = vset.pattern.permute.xlu0 3
      %345 = vperm.xlu0 %344, %v151
      %v346 = vpop.permute.xlu0 %345
      %348 = vset.pattern.permute.xlu0 3
      %349 = vperm.xlu0 %348, %v152
      %v350 = vpop.permute.xlu0 %349
      %352 = vset.pattern.permute.xlu0 3
      %353 = vperm.xlu0 %352, %v153
      %v354 = vpop.permute.xlu0 %353
      %356 = vset.pattern.permute.xlu0 3
      %357 = vperm.xlu0 %356, %v154
      %v358 = vpop.permute.xlu0 %357
      %v360 = vperm.slane %v155, 3
      %v361 = vsub.f32 %v330, %v360
      %v362 = vsub.f32 %v334, %v360
      %v363 = vsub.f32 %v338, %v360
      %v364 = vsub.f32 %v342, %v360
      %v365 = vsub.f32 %v346, %v360
      %v366 = vsub.f32 %v350, %v360
      %v367 = vsub.f32 %v354, %v360
      %v368 = vsub.f32 %v358, %v360
      %v369 = vand.u32 2147483647, %v361
      %v370 = vand.u32 2147483647, %v362
      %v371 = vand.u32 2147483647, %v363
      %v372 = vand.u32 2147483647, %v364
      %v373 = vand.u32 2147483647, %v365
      %v374 = vand.u32 2147483647, %v366
      %v375 = vand.u32 2147483647, %v367
      %v376 = vand.u32 2147483647, %v368
      %v377 = vadd.f32 %v320, %v369
      %v378 = vadd.f32 %v321, %v370
      %v379 = vadd.f32 %v322, %v371
      %v380 = vadd.f32 %v323, %v372
      %v381 = vadd.f32 %v324, %v373
      %v382 = vadd.f32 %v325, %v374
      %v383 = vadd.f32 %v326, %v375
      %v384 = vadd.f32 %v327, %v376
      %385 = vset.pattern.permute.xlu0 10
      %386 = vperm.xlu0 %385, %v147
      %v387 = vpop.permute.xlu0 %386
      %389 = vset.pattern.permute.xlu0 10
      %390 = vperm.xlu0 %389, %v148
      %v391 = vpop.permute.xlu0 %390
      %393 = vset.pattern.permute.xlu0 10
      %394 = vperm.xlu0 %393, %v149
      %v395 = vpop.permute.xlu0 %394
      %397 = vset.pattern.permute.xlu0 10
      %398 = vperm.xlu0 %397, %v150
      %v399 = vpop.permute.xlu0 %398
      %401 = vset.pattern.permute.xlu0 10
      %402 = vperm.xlu0 %401, %v151
      %v403 = vpop.permute.xlu0 %402
      %405 = vset.pattern.permute.xlu0 10
      %406 = vperm.xlu0 %405, %v152
      %v407 = vpop.permute.xlu0 %406
      %409 = vset.pattern.permute.xlu0 10
      %410 = vperm.xlu0 %409, %v153
      %v411 = vpop.permute.xlu0 %410
      %413 = vset.pattern.permute.xlu0 10
      %414 = vperm.xlu0 %413, %v154
      %v415 = vpop.permute.xlu0 %414
      %v417 = vperm.slane %v156, 1
      %v418 = vsub.f32 %v387, %v417
      %v419 = vsub.f32 %v391, %v417
      %v420 = vsub.f32 %v395, %v417
      %v421 = vsub.f32 %v399, %v417
      %v422 = vsub.f32 %v403, %v417
      %v423 = vsub.f32 %v407, %v417
      %v424 = vsub.f32 %v411, %v417
      %v425 = vsub.f32 %v415, %v417
      %v426 = vand.u32 2147483647, %v418
      %v427 = vand.u32 2147483647, %v419
      %v428 = vand.u32 2147483647, %v420
      %v429 = vand.u32 2147483647, %v421
      %v430 = vand.u32 2147483647, %v422
      %v431 = vand.u32 2147483647, %v423
      %v432 = vand.u32 2147483647, %v424
      %v433 = vand.u32 2147483647, %v425
      %434 = vset.pattern.permute.xlu0 11
      %435 = vperm.xlu0 %434, %v147
      %v436 = vpop.permute.xlu0 %435
      %438 = vset.pattern.permute.xlu0 11
      %439 = vperm.xlu0 %438, %v148
      %v440 = vpop.permute.xlu0 %439
      %442 = vset.pattern.permute.xlu0 11
      %443 = vperm.xlu0 %442, %v149
      %v444 = vpop.permute.xlu0 %443
      %446 = vset.pattern.permute.xlu0 11
      %447 = vperm.xlu0 %446, %v150
      %v448 = vpop.permute.xlu0 %447
      %450 = vset.pattern.permute.xlu0 11
      %451 = vperm.xlu0 %450, %v151
      %v452 = vpop.permute.xlu0 %451
      %454 = vset.pattern.permute.xlu0 11
      %455 = vperm.xlu0 %454, %v152
      %v456 = vpop.permute.xlu0 %455
      %458 = vset.pattern.permute.xlu0 11
      %459 = vperm.xlu0 %458, %v153
      %v460 = vpop.permute.xlu0 %459
      %462 = vset.pattern.permute.xlu0 11
      %463 = vperm.xlu0 %462, %v154
      %v464 = vpop.permute.xlu0 %463
      %v466 = vperm.slane %v156, 2
      %v467 = vsub.f32 %v436, %v466
      %v468 = vsub.f32 %v440, %v466
      %v469 = vsub.f32 %v444, %v466
      %v470 = vsub.f32 %v448, %v466
      %v471 = vsub.f32 %v452, %v466
      %v472 = vsub.f32 %v456, %v466
      %v473 = vsub.f32 %v460, %v466
      %v474 = vsub.f32 %v464, %v466
      %v475 = vand.u32 2147483647, %v467
      %v476 = vand.u32 2147483647, %v468
      %v477 = vand.u32 2147483647, %v469
      %v478 = vand.u32 2147483647, %v470
      %v479 = vand.u32 2147483647, %v471
      %v480 = vand.u32 2147483647, %v472
      %v481 = vand.u32 2147483647, %v473
      %v482 = vand.u32 2147483647, %v474
      %v483 = vadd.f32 %v426, %v475
      %v484 = vadd.f32 %v427, %v476
      %v485 = vadd.f32 %v428, %v477
      %v486 = vadd.f32 %v429, %v478
      %v487 = vadd.f32 %v430, %v479
      %v488 = vadd.f32 %v431, %v480
      %v489 = vadd.f32 %v432, %v481
      %v490 = vadd.f32 %v433, %v482
      %491 = vset.pattern.permute.xlu0 12
      %492 = vperm.xlu0 %491, %v147
      %v493 = vpop.permute.xlu0 %492
      %495 = vset.pattern.permute.xlu0 12
      %496 = vperm.xlu0 %495, %v148
      %v497 = vpop.permute.xlu0 %496
      %499 = vset.pattern.permute.xlu0 12
      %500 = vperm.xlu0 %499, %v149
      %v501 = vpop.permute.xlu0 %500
      %503 = vset.pattern.permute.xlu0 12
      %504 = vperm.xlu0 %503, %v150
      %v505 = vpop.permute.xlu0 %504
      %507 = vset.pattern.permute.xlu0 12
      %508 = vperm.xlu0 %507, %v151
      %v509 = vpop.permute.xlu0 %508
      %511 = vset.pattern.permute.xlu0 12
      %512 = vperm.xlu0 %511, %v152
      %v513 = vpop.permute.xlu0 %512
      %515 = vset.pattern.permute.xlu0 12
      %516 = vperm.xlu0 %515, %v153
      %v517 = vpop.permute.xlu0 %516
      %519 = vset.pattern.permute.xlu0 12
      %520 = vperm.xlu0 %519, %v154
      %v521 = vpop.permute.xlu0 %520
      %v523 = vperm.slane %v156, 3
      %v524 = vsub.f32 %v493, %v523
      %v525 = vsub.f32 %v497, %v523
      %v526 = vsub.f32 %v501, %v523
      %v527 = vsub.f32 %v505, %v523
      %v528 = vsub.f32 %v509, %v523
      %v529 = vsub.f32 %v513, %v523
      %v530 = vsub.f32 %v517, %v523
      %v531 = vsub.f32 %v521, %v523
      %v532 = vand.u32 2147483647, %v524
      %v533 = vand.u32 2147483647, %v525
      %v534 = vand.u32 2147483647, %v526
      %v535 = vand.u32 2147483647, %v527
      %v536 = vand.u32 2147483647, %v528
      %v537 = vand.u32 2147483647, %v529
      %v538 = vand.u32 2147483647, %v530
      %v539 = vand.u32 2147483647, %v531
      %v540 = vadd.f32 %v483, %v532
      %v541 = vadd.f32 %v484, %v533
      %v542 = vadd.f32 %v485, %v534
      %v543 = vadd.f32 %v486, %v535
      %v544 = vadd.f32 %v487, %v536
      %v545 = vadd.f32 %v488, %v537
      %v546 = vadd.f32 %v489, %v538
      %v547 = vadd.f32 %v490, %v539
      %548 = vset.pattern.permute.xlu0 13
      %549 = vperm.xlu0 %548, %v147
      %v550 = vpop.permute.xlu0 %549
      %552 = vset.pattern.permute.xlu0 13
      %553 = vperm.xlu0 %552, %v148
      %v554 = vpop.permute.xlu0 %553
      %556 = vset.pattern.permute.xlu0 13
      %557 = vperm.xlu0 %556, %v149
      %v558 = vpop.permute.xlu0 %557
      %560 = vset.pattern.permute.xlu0 13
      %561 = vperm.xlu0 %560, %v150
      %v562 = vpop.permute.xlu0 %561
      %564 = vset.pattern.permute.xlu0 13
      %565 = vperm.xlu0 %564, %v151
      %v566 = vpop.permute.xlu0 %565
      %568 = vset.pattern.permute.xlu0 13
      %569 = vperm.xlu0 %568, %v152
      %v570 = vpop.permute.xlu0 %569
      %572 = vset.pattern.permute.xlu0 13
      %573 = vperm.xlu0 %572, %v153
      %v574 = vpop.permute.xlu0 %573
      %576 = vset.pattern.permute.xlu0 13
      %577 = vperm.xlu0 %576, %v154
      %v578 = vpop.permute.xlu0 %577
      %v580 = vperm.slane %v156, 4
      %v581 = vsub.f32 %v550, %v580
      %v582 = vsub.f32 %v554, %v580
      %v583 = vsub.f32 %v558, %v580
      %v584 = vsub.f32 %v562, %v580
      %v585 = vsub.f32 %v566, %v580
      %v586 = vsub.f32 %v570, %v580
      %v587 = vsub.f32 %v574, %v580
      %v588 = vsub.f32 %v578, %v580
      %v589 = vand.u32 2147483647, %v581
      %v590 = vand.u32 2147483647, %v582
      %v591 = vand.u32 2147483647, %v583
      %v592 = vand.u32 2147483647, %v584
      %v593 = vand.u32 2147483647, %v585
      %v594 = vand.u32 2147483647, %v586
      %v595 = vand.u32 2147483647, %v587
      %v596 = vand.u32 2147483647, %v588
      %v597 = vadd.f32 %v540, %v589
      %v598 = vadd.f32 %v541, %v590
      %v599 = vadd.f32 %v542, %v591
      %v600 = vadd.f32 %v543, %v592
      %v601 = vadd.f32 %v544, %v593
      %v602 = vadd.f32 %v545, %v594
      %v603 = vadd.f32 %v546, %v595
      %v604 = vadd.f32 %v547, %v596
      %605 = vset.pattern.permute.xlu0 14
      %606 = vperm.xlu0 %605, %v147
      %v607 = vpop.permute.xlu0 %606
      %609 = vset.pattern.permute.xlu0 14
      %610 = vperm.xlu0 %609, %v148
      %v611 = vpop.permute.xlu0 %610
      %613 = vset.pattern.permute.xlu0 14
      %614 = vperm.xlu0 %613, %v149
      %v615 = vpop.permute.xlu0 %614
      %617 = vset.pattern.permute.xlu0 14
      %618 = vperm.xlu0 %617, %v150
      %v619 = vpop.permute.xlu0 %618
      %621 = vset.pattern.permute.xlu0 14
      %622 = vperm.xlu0 %621, %v151
      %v623 = vpop.permute.xlu0 %622
      %625 = vset.pattern.permute.xlu0 14
      %626 = vperm.xlu0 %625, %v152
      %v627 = vpop.permute.xlu0 %626
      %629 = vset.pattern.permute.xlu0 14
      %630 = vperm.xlu0 %629, %v153
      %v631 = vpop.permute.xlu0 %630
      %633 = vset.pattern.permute.xlu0 14
      %634 = vperm.xlu0 %633, %v154
      %v635 = vpop.permute.xlu0 %634
      %v637 = vperm.slane %v156, 5
      %v638 = vsub.f32 %v607, %v637
      %v639 = vsub.f32 %v611, %v637
      %v640 = vsub.f32 %v615, %v637
      %v641 = vsub.f32 %v619, %v637
      %v642 = vsub.f32 %v623, %v637
      %v643 = vsub.f32 %v627, %v637
      %v644 = vsub.f32 %v631, %v637
      %v645 = vsub.f32 %v635, %v637
      %v646 = vand.u32 2147483647, %v638
      %v647 = vand.u32 2147483647, %v639
      %v648 = vand.u32 2147483647, %v640
      %v649 = vand.u32 2147483647, %v641
      %v650 = vand.u32 2147483647, %v642
      %v651 = vand.u32 2147483647, %v643
      %v652 = vand.u32 2147483647, %v644
      %v653 = vand.u32 2147483647, %v645
      %v654 = vadd.f32 %v597, %v646
      %v655 = vadd.f32 %v598, %v647
      %v656 = vadd.f32 %v599, %v648
      %v657 = vadd.f32 %v600, %v649
      %v658 = vadd.f32 %v601, %v650
      %v659 = vadd.f32 %v602, %v651
      %v660 = vadd.f32 %v603, %v652
      %v661 = vadd.f32 %v604, %v653
      %662 = vset.pattern.permute.xlu0 15
      %663 = vperm.xlu0 %662, %v147
      %v664 = vpop.permute.xlu0 %663
      %666 = vset.pattern.permute.xlu0 15
      %667 = vperm.xlu0 %666, %v148
      %v668 = vpop.permute.xlu0 %667
      %670 = vset.pattern.permute.xlu0 15
      %671 = vperm.xlu0 %670, %v149
      %v672 = vpop.permute.xlu0 %671
      %674 = vset.pattern.permute.xlu0 15
      %675 = vperm.xlu0 %674, %v150
      %v676 = vpop.permute.xlu0 %675
      %678 = vset.pattern.permute.xlu0 15
      %679 = vperm.xlu0 %678, %v151
      %v680 = vpop.permute.xlu0 %679
      %682 = vset.pattern.permute.xlu0 15
      %683 = vperm.xlu0 %682, %v152
      %v684 = vpop.permute.xlu0 %683
      %686 = vset.pattern.permute.xlu0 15
      %687 = vperm.xlu0 %686, %v153
      %v688 = vpop.permute.xlu0 %687
      %690 = vset.pattern.permute.xlu0 15
      %691 = vperm.xlu0 %690, %v154
      %v692 = vpop.permute.xlu0 %691
      %v694 = vperm.slane %v156, 6
      %v695 = vsub.f32 %v664, %v694
      %v696 = vsub.f32 %v668, %v694
      %v697 = vsub.f32 %v672, %v694
      %v698 = vsub.f32 %v676, %v694
      %v699 = vsub.f32 %v680, %v694
      %v700 = vsub.f32 %v684, %v694
      %v701 = vsub.f32 %v688, %v694
      %v702 = vsub.f32 %v692, %v694
      %v703 = vand.u32 2147483647, %v695
      %v704 = vand.u32 2147483647, %v696
      %v705 = vand.u32 2147483647, %v697
      %v706 = vand.u32 2147483647, %v698
      %v707 = vand.u32 2147483647, %v699
      %v708 = vand.u32 2147483647, %v700
      %v709 = vand.u32 2147483647, %v701
      %v710 = vand.u32 2147483647, %v702
      %v711 = vadd.f32 %v654, %v703
      %v712 = vadd.f32 %v655, %v704
      %v713 = vadd.f32 %v656, %v705
      %v714 = vadd.f32 %v657, %v706
      %v715 = vadd.f32 %v658, %v707
      %v716 = vadd.f32 %v659, %v708
      %v717 = vadd.f32 %v660, %v709
      %v718 = vadd.f32 %v661, %v710
      %719 = vset.pattern.permute.xlu0 5
      %720 = vperm.xlu0 %719, %v147
      %v721 = vpop.permute.xlu0 %720
      %723 = vset.pattern.permute.xlu0 5
      %724 = vperm.xlu0 %723, %v148
      %v725 = vpop.permute.xlu0 %724
      %727 = vset.pattern.permute.xlu0 5
      %728 = vperm.xlu0 %727, %v149
      %v729 = vpop.permute.xlu0 %728
      %731 = vset.pattern.permute.xlu0 5
      %732 = vperm.xlu0 %731, %v150
      %v733 = vpop.permute.xlu0 %732
      %735 = vset.pattern.permute.xlu0 5
      %736 = vperm.xlu0 %735, %v151
      %v737 = vpop.permute.xlu0 %736
      %739 = vset.pattern.permute.xlu0 5
      %740 = vperm.xlu0 %739, %v152
      %v741 = vpop.permute.xlu0 %740
      %743 = vset.pattern.permute.xlu0 5
      %744 = vperm.xlu0 %743, %v153
      %v745 = vpop.permute.xlu0 %744
      %747 = vset.pattern.permute.xlu0 5
      %748 = vperm.xlu0 %747, %v154
      %v749 = vpop.permute.xlu0 %748
      %v751 = vperm.slane %v155, 5
      %v752 = vmin.f32 %v721, %v751
      %v753 = vmin.f32 %v725, %v751
      %v754 = vmin.f32 %v729, %v751
      %v755 = vmin.f32 %v733, %v751
      %v756 = vmin.f32 %v737, %v751
      %v757 = vmin.f32 %v741, %v751
      %v758 = vmin.f32 %v745, %v751
      %v759 = vmin.f32 %v749, %v751
      %760 = vset.pattern.permute.xlu0 4
      %761 = vperm.xlu0 %760, %v147
      %v762 = vpop.permute.xlu0 %761
      %764 = vset.pattern.permute.xlu0 4
      %765 = vperm.xlu0 %764, %v148
      %v766 = vpop.permute.xlu0 %765
      %768 = vset.pattern.permute.xlu0 4
      %769 = vperm.xlu0 %768, %v149
      %v770 = vpop.permute.xlu0 %769
      %772 = vset.pattern.permute.xlu0 4
      %773 = vperm.xlu0 %772, %v150
      %v774 = vpop.permute.xlu0 %773
      %776 = vset.pattern.permute.xlu0 4
      %777 = vperm.xlu0 %776, %v151
      %v778 = vpop.permute.xlu0 %777
      %780 = vset.pattern.permute.xlu0 4
      %781 = vperm.xlu0 %780, %v152
      %v782 = vpop.permute.xlu0 %781
      %784 = vset.pattern.permute.xlu0 4
      %785 = vperm.xlu0 %784, %v153
      %v786 = vpop.permute.xlu0 %785
      %788 = vset.pattern.permute.xlu0 4
      %789 = vperm.xlu0 %788, %v154
      %v790 = vpop.permute.xlu0 %789
      %v792 = vperm.slane %v155, 4
      %v793 = vmax.f32 %v762, %v792
      %v794 = vmax.f32 %v766, %v792
      %v795 = vmax.f32 %v770, %v792
      %v796 = vmax.f32 %v774, %v792
      %v797 = vmax.f32 %v778, %v792
      %v798 = vmax.f32 %v782, %v792
      %v799 = vmax.f32 %v786, %v792
      %v800 = vmax.f32 %v790, %v792
      %v801 = vsub.f32 %v752, %v793
      %v802 = vsub.f32 %v753, %v794
      %v803 = vsub.f32 %v754, %v795
      %v804 = vsub.f32 %v755, %v796
      %v805 = vsub.f32 %v756, %v797
      %v806 = vsub.f32 %v757, %v798
      %v807 = vsub.f32 %v758, %v799
      %v808 = vsub.f32 %v759, %v800
      %v809 = vmax.f32 %v801, 0.0
      %v810 = vmax.f32 %v802, 0.0
      %v811 = vmax.f32 %v803, 0.0
      %v812 = vmax.f32 %v804, 0.0
      %v813 = vmax.f32 %v805, 0.0
      %v814 = vmax.f32 %v806, 0.0
      %v815 = vmax.f32 %v807, 0.0
      %v816 = vmax.f32 %v808, 0.0
      %817 = vset.pattern.permute.xlu0 7
      %818 = vperm.xlu0 %817, %v147
      %v819 = vpop.permute.xlu0 %818
      %821 = vset.pattern.permute.xlu0 7
      %822 = vperm.xlu0 %821, %v148
      %v823 = vpop.permute.xlu0 %822
      %825 = vset.pattern.permute.xlu0 7
      %826 = vperm.xlu0 %825, %v149
      %v827 = vpop.permute.xlu0 %826
      %829 = vset.pattern.permute.xlu0 7
      %830 = vperm.xlu0 %829, %v150
      %v831 = vpop.permute.xlu0 %830
      %833 = vset.pattern.permute.xlu0 7
      %834 = vperm.xlu0 %833, %v151
      %v835 = vpop.permute.xlu0 %834
      %837 = vset.pattern.permute.xlu0 7
      %838 = vperm.xlu0 %837, %v152
      %v839 = vpop.permute.xlu0 %838
      %841 = vset.pattern.permute.xlu0 7
      %842 = vperm.xlu0 %841, %v153
      %v843 = vpop.permute.xlu0 %842
      %845 = vset.pattern.permute.xlu0 7
      %846 = vperm.xlu0 %845, %v154
      %v847 = vpop.permute.xlu0 %846
      %v849 = vperm.slane %v155, 7
      %v850 = vmin.f32 %v819, %v849
      %v851 = vmin.f32 %v823, %v849
      %v852 = vmin.f32 %v827, %v849
      %v853 = vmin.f32 %v831, %v849
      %v854 = vmin.f32 %v835, %v849
      %v855 = vmin.f32 %v839, %v849
      %v856 = vmin.f32 %v843, %v849
      %v857 = vmin.f32 %v847, %v849
      %858 = vset.pattern.permute.xlu0 6
      %859 = vperm.xlu0 %858, %v147
      %v860 = vpop.permute.xlu0 %859
      %862 = vset.pattern.permute.xlu0 6
      %863 = vperm.xlu0 %862, %v148
      %v864 = vpop.permute.xlu0 %863
      %866 = vset.pattern.permute.xlu0 6
      %867 = vperm.xlu0 %866, %v149
      %v868 = vpop.permute.xlu0 %867
      %870 = vset.pattern.permute.xlu0 6
      %871 = vperm.xlu0 %870, %v150
      %v872 = vpop.permute.xlu0 %871
      %874 = vset.pattern.permute.xlu0 6
      %875 = vperm.xlu0 %874, %v151
      %v876 = vpop.permute.xlu0 %875
      %878 = vset.pattern.permute.xlu0 6
      %879 = vperm.xlu0 %878, %v152
      %v880 = vpop.permute.xlu0 %879
      %882 = vset.pattern.permute.xlu0 6
      %883 = vperm.xlu0 %882, %v153
      %v884 = vpop.permute.xlu0 %883
      %886 = vset.pattern.permute.xlu0 6
      %887 = vperm.xlu0 %886, %v154
      %v888 = vpop.permute.xlu0 %887
      %v890 = vperm.slane %v155, 6
      %v891 = vmax.f32 %v860, %v890
      %v892 = vmax.f32 %v864, %v890
      %v893 = vmax.f32 %v868, %v890
      %v894 = vmax.f32 %v872, %v890
      %v895 = vmax.f32 %v876, %v890
      %v896 = vmax.f32 %v880, %v890
      %v897 = vmax.f32 %v884, %v890
      %v898 = vmax.f32 %v888, %v890
      %v899 = vsub.f32 %v850, %v891
      %v900 = vsub.f32 %v851, %v892
      %v901 = vsub.f32 %v852, %v893
      %v902 = vsub.f32 %v853, %v894
      %v903 = vsub.f32 %v854, %v895
      %v904 = vsub.f32 %v855, %v896
      %v905 = vsub.f32 %v856, %v897
      %v906 = vsub.f32 %v857, %v898
      %v907 = vmax.f32 %v899, 0.0
      %v908 = vmax.f32 %v900, 0.0
      %v909 = vmax.f32 %v901, 0.0
      %v910 = vmax.f32 %v902, 0.0
      %v911 = vmax.f32 %v903, 0.0
      %v912 = vmax.f32 %v904, 0.0
      %v913 = vmax.f32 %v905, 0.0
      %v914 = vmax.f32 %v906, 0.0
      %v915 = vmul.f32 %v809, %v907
      %v916 = vmul.f32 %v810, %v908
      %v917 = vmul.f32 %v811, %v909
      %v918 = vmul.f32 %v812, %v910
      %v919 = vmul.f32 %v813, %v911
      %v920 = vmul.f32 %v814, %v912
      %v921 = vmul.f32 %v815, %v913
      %v922 = vmul.f32 %v816, %v914
      %923 = vset.pattern.permute.xlu0 8
      %924 = vperm.xlu0 %923, %v147
      %v925 = vpop.permute.xlu0 %924
      %927 = vset.pattern.permute.xlu0 8
      %928 = vperm.xlu0 %927, %v148
      %v929 = vpop.permute.xlu0 %928
      %931 = vset.pattern.permute.xlu0 8
      %932 = vperm.xlu0 %931, %v149
      %v933 = vpop.permute.xlu0 %932
      %935 = vset.pattern.permute.xlu0 8
      %936 = vperm.xlu0 %935, %v150
      %v937 = vpop.permute.xlu0 %936
      %939 = vset.pattern.permute.xlu0 8
      %940 = vperm.xlu0 %939, %v151
      %v941 = vpop.permute.xlu0 %940
      %943 = vset.pattern.permute.xlu0 8
      %944 = vperm.xlu0 %943, %v152
      %v945 = vpop.permute.xlu0 %944
      %947 = vset.pattern.permute.xlu0 8
      %948 = vperm.xlu0 %947, %v153
      %v949 = vpop.permute.xlu0 %948
      %951 = vset.pattern.permute.xlu0 8
      %952 = vperm.xlu0 %951, %v154
      %v953 = vpop.permute.xlu0 %952
      %v955 = vperm.slane %v156, 0
      %v956 = vadd.f32 %v925, %v955
      %v957 = vadd.f32 %v929, %v955
      %v958 = vadd.f32 %v933, %v955
      %v959 = vadd.f32 %v937, %v955
      %v960 = vadd.f32 %v941, %v955
      %v961 = vadd.f32 %v945, %v955
      %v962 = vadd.f32 %v949, %v955
      %v963 = vadd.f32 %v953, %v955
      %v964 = vsub.f32 %v956, %v915
      %v965 = vsub.f32 %v957, %v916
      %v966 = vsub.f32 %v958, %v917
      %v967 = vsub.f32 %v959, %v918
      %v968 = vsub.f32 %v960, %v919
      %v969 = vsub.f32 %v961, %v920
      %v970 = vsub.f32 %v962, %v921
      %v971 = vsub.f32 %v963, %v922
      %v972 = vadd.f32 %v964, 1e-09
      %v973 = vadd.f32 %v965, 1e-09
      %v974 = vadd.f32 %v966, 1e-09
      %v975 = vadd.f32 %v967, 1e-09
      %v976 = vadd.f32 %v968, 1e-09
      %v977 = vadd.f32 %v969, 1e-09
      %v978 = vadd.f32 %v970, 1e-09
      %v979 = vadd.f32 %v971, 1e-09
      %v980 = vrcp.pop %v972
      %v981 = vmul.f32 %v972, %v980
      %v982 = vsub.f32 1.0, %v981
      %v983 = vmul.f32 %v980, %v982
      %v984 = vadd.f32 %v980, %v983
      %vm985 = vweird.f32 %v972
      %vm986 = vweird.f32 %v980
      %vm987 = vmor %vm985, %vm986
      %v988 = vsel %vm987, %v980, %v984
      %v989 = vand.u32 2147483647, %v972
      %vm990 = vcmp.eq.f32.partialorder %v989, 8.507059e+37
      %v991 = vand.u32 %v972, 2147483648
      %v992 = vor.u32 1.1754944e-38, %v991
      %v993 = vsel %vm990, %v992, %v988
      %v994 = vrcp.pop %v973
      %v995 = vmul.f32 %v973, %v994
      %v996 = vsub.f32 1.0, %v995
      %v997 = vmul.f32 %v994, %v996
      %v998 = vadd.f32 %v994, %v997
      %vm999 = vweird.f32 %v973
      %vm1000 = vweird.f32 %v994
      %vm1001 = vmor %vm999, %vm1000
      %v1002 = vsel %vm1001, %v994, %v998
      %v1003 = vand.u32 2147483647, %v973
      %vm1004 = vcmp.eq.f32.partialorder %v1003, 8.507059e+37
      %v1005 = vand.u32 %v973, 2147483648
      %v1006 = vor.u32 1.1754944e-38, %v1005
      %v1007 = vsel %vm1004, %v1006, %v1002
      %v1008 = vrcp.pop %v974
      %v1009 = vmul.f32 %v974, %v1008
      %v1010 = vsub.f32 1.0, %v1009
      %v1011 = vmul.f32 %v1008, %v1010
      %v1012 = vadd.f32 %v1008, %v1011
      %vm1013 = vweird.f32 %v974
      %vm1014 = vweird.f32 %v1008
      %vm1015 = vmor %vm1013, %vm1014
      %v1016 = vsel %vm1015, %v1008, %v1012
      %v1017 = vand.u32 2147483647, %v974
      %vm1018 = vcmp.eq.f32.partialorder %v1017, 8.507059e+37
      %v1019 = vand.u32 %v974, 2147483648
      %v1020 = vor.u32 1.1754944e-38, %v1019
      %v1021 = vsel %vm1018, %v1020, %v1016
      %v1022 = vrcp.pop %v975
      %v1023 = vmul.f32 %v975, %v1022
      %v1024 = vsub.f32 1.0, %v1023
      %v1025 = vmul.f32 %v1022, %v1024
      %v1026 = vadd.f32 %v1022, %v1025
      %vm1027 = vweird.f32 %v975
      %vm1028 = vweird.f32 %v1022
      %vm1029 = vmor %vm1027, %vm1028
      %v1030 = vsel %vm1029, %v1022, %v1026
      %v1031 = vand.u32 2147483647, %v975
      %vm1032 = vcmp.eq.f32.partialorder %v1031, 8.507059e+37
      %v1033 = vand.u32 %v975, 2147483648
      %v1034 = vor.u32 1.1754944e-38, %v1033
      %v1035 = vsel %vm1032, %v1034, %v1030
      %v1036 = vrcp.pop %v976
      %v1037 = vmul.f32 %v976, %v1036
      %v1038 = vsub.f32 1.0, %v1037
      %v1039 = vmul.f32 %v1036, %v1038
      %v1040 = vadd.f32 %v1036, %v1039
      %vm1041 = vweird.f32 %v976
      %vm1042 = vweird.f32 %v1036
      %vm1043 = vmor %vm1041, %vm1042
      %v1044 = vsel %vm1043, %v1036, %v1040
      %v1045 = vand.u32 2147483647, %v976
      %vm1046 = vcmp.eq.f32.partialorder %v1045, 8.507059e+37
      %v1047 = vand.u32 %v976, 2147483648
      %v1048 = vor.u32 1.1754944e-38, %v1047
      %v1049 = vsel %vm1046, %v1048, %v1044
      %v1050 = vrcp.pop %v977
      %v1051 = vmul.f32 %v977, %v1050
      %v1052 = vsub.f32 1.0, %v1051
      %v1053 = vmul.f32 %v1050, %v1052
      %v1054 = vadd.f32 %v1050, %v1053
      %vm1055 = vweird.f32 %v977
      %vm1056 = vweird.f32 %v1050
      %vm1057 = vmor %vm1055, %vm1056
      %v1058 = vsel %vm1057, %v1050, %v1054
      %v1059 = vand.u32 2147483647, %v977
      %vm1060 = vcmp.eq.f32.partialorder %v1059, 8.507059e+37
      %v1061 = vand.u32 %v977, 2147483648
      %v1062 = vor.u32 1.1754944e-38, %v1061
      %v1063 = vsel %vm1060, %v1062, %v1058
      %v1064 = vrcp.pop %v978
      %v1065 = vmul.f32 %v978, %v1064
      %v1066 = vsub.f32 1.0, %v1065
      %v1067 = vmul.f32 %v1064, %v1066
      %v1068 = vadd.f32 %v1064, %v1067
      %vm1069 = vweird.f32 %v978
      %vm1070 = vweird.f32 %v1064
      %vm1071 = vmor %vm1069, %vm1070
      %v1072 = vsel %vm1071, %v1064, %v1068
      %v1073 = vand.u32 2147483647, %v978
      %vm1074 = vcmp.eq.f32.partialorder %v1073, 8.507059e+37
      %v1075 = vand.u32 %v978, 2147483648
      %v1076 = vor.u32 1.1754944e-38, %v1075
      %v1077 = vsel %vm1074, %v1076, %v1072
      %v1078 = vrcp.pop %v979
      %v1079 = vmul.f32 %v979, %v1078
      %v1080 = vsub.f32 1.0, %v1079
      %v1081 = vmul.f32 %v1078, %v1080
      %v1082 = vadd.f32 %v1078, %v1081
      %vm1083 = vweird.f32 %v979
      %vm1084 = vweird.f32 %v1078
      %vm1085 = vmor %vm1083, %vm1084
      %v1086 = vsel %vm1085, %v1078, %v1082
      %v1087 = vand.u32 2147483647, %v979
      %vm1088 = vcmp.eq.f32.partialorder %v1087, 8.507059e+37
      %v1089 = vand.u32 %v979, 2147483648
      %v1090 = vor.u32 1.1754944e-38, %v1089
      %v1091 = vsel %vm1088, %v1090, %v1086
      %v1092 = vmul.f32 %v915, %v993
      %v1093 = vmul.f32 %v916, %v1007
      %v1094 = vmul.f32 %v917, %v1021
      %v1095 = vmul.f32 %v918, %v1035
      %v1096 = vmul.f32 %v919, %v1049
      %v1097 = vmul.f32 %v920, %v1063
      %v1098 = vmul.f32 %v921, %v1077
      %v1099 = vmul.f32 %v922, %v1091
      %v1100 = vadd.f32 %v711, %v377
      %v1101 = vadd.f32 %v712, %v378
      %v1102 = vadd.f32 %v713, %v379
      %v1103 = vadd.f32 %v714, %v380
      %v1104 = vadd.f32 %v715, %v381
      %v1105 = vadd.f32 %v716, %v382
      %v1106 = vadd.f32 %v717, %v383
      %v1107 = vadd.f32 %v718, %v384
      %v1108 = vsub.f32 %v1100, %v1092
      %v1109 = vsub.f32 %v1101, %v1093
      %v1110 = vsub.f32 %v1102, %v1094
      %v1111 = vsub.f32 %v1103, %v1095
      %v1112 = vsub.f32 %v1104, %v1096
      %v1113 = vsub.f32 %v1105, %v1097
      %v1114 = vsub.f32 %v1106, %v1098
      %v1115 = vsub.f32 %v1107, %v1099
      %1116 = vset.pattern.permute.xlu0 9
      %1117 = vperm.xlu0 %1116, %v147
      %v1118 = vpop.permute.xlu0 %1117
      %1120 = vset.pattern.permute.xlu0 9
      %1121 = vperm.xlu0 %1120, %v148
      %v1122 = vpop.permute.xlu0 %1121
      %1124 = vset.pattern.permute.xlu0 9
      %1125 = vperm.xlu0 %1124, %v149
      %v1126 = vpop.permute.xlu0 %1125
      %1128 = vset.pattern.permute.xlu0 9
      %1129 = vperm.xlu0 %1128, %v150
      %v1130 = vpop.permute.xlu0 %1129
      %1132 = vset.pattern.permute.xlu0 9
      %1133 = vperm.xlu0 %1132, %v151
      %v1134 = vpop.permute.xlu0 %1133
      %1136 = vset.pattern.permute.xlu0 9
      %1137 = vperm.xlu0 %1136, %v152
      %v1138 = vpop.permute.xlu0 %1137
      %1140 = vset.pattern.permute.xlu0 9
      %1141 = vperm.xlu0 %1140, %v153
      %v1142 = vpop.permute.xlu0 %1141
      %1144 = vset.pattern.permute.xlu0 9
      %1145 = vperm.xlu0 %1144, %v154
      %v1146 = vpop.permute.xlu0 %1145
      %v1148 = vadd.f32 %v1108, %v1118
      %v1149 = vadd.f32 %v1109, %v1122
      %v1150 = vadd.f32 %v1110, %v1126
      %v1151 = vadd.f32 %v1111, %v1130
      %v1152 = vadd.f32 %v1112, %v1134
      %v1153 = vadd.f32 %v1113, %v1138
      %v1154 = vadd.f32 %v1114, %v1142
      %v1155 = vadd.f32 %v1115, %v1146
      %1156 = vst [vmem:[%s145] sm:$0xff] %v1148
      %1157 = vst [vmem:[%s145 + $0x8] sm:$0xff] %v1149
      %1158 = vst [vmem:[%s145 + $0x10] sm:$0xff] %v1150
      %1159 = vst [vmem:[%s145 + $0x18] sm:$0xff] %v1151
      %1160 = vst [vmem:[%s145 + $0x20] sm:$0xff] %v1152
      %1161 = vst [vmem:[%s145 + $0x28] sm:$0xff] %v1153
      %1162 = vst [vmem:[%s145 + $0x30] sm:$0xff] %v1154
      %1163 = vst [vmem:[%s145 + $0x38] sm:$0xff] %v1155
      %s1164 = smul.u32 8, %s13
      %p1165 = scmp.lt.s32.totalorder %s1164, 15
      %s1166 = scalar_select %p1165, %s1164, 15
      %s1167 = smul.addr %s1166, 8
      %s1168 = scalar_lea.vmem %s2, %s1167
      // Predicated region
      $region29: #{fwd.1} parent=27 // pred_check
        %p1169 = pneg %p78
      $region30: #{fwd.1} parent=27 // pred_check_branch
        %1171 = sbr.rel (%p1169) target = $region32
      $region31: #{fwd.1} parent=27 // pred_region
        %s1172 = smul.u32 8, %s13
      $region32: #{fwd.1} parent=27 // pred_fallthru
        _
    $region28: #{fwd.1} parent=5 // pred_fallthru
      _
    %p1173 = scmp.le.s32.totalorder 2, %s8
    // Predicated region
    $region33: #{fwd.1} parent=5 // pred_check
      %p1174 = pneg %p1173
    $region34: #{fwd.1} parent=5 // pred_check_branch
      %1176 = sbr.rel (%p1174) target = $region36
    $region35: #{fwd.1} parent=5 // pred_region
      %s1177 = ssub.s32 %s8, 2
      // Predicated region
      $region37: #{fwd.1} parent=35 // pred_check
        %p1178 = pneg %p84
      $region38: #{fwd.1} parent=35 // pred_check_branch
        %1180 = sbr.rel (%p1178) target = $region40
      $region39: #{fwd.1} parent=35 // pred_region
        %s1181 = smul.u32 8, %s14
        %p1182 = scmp.lt.s32.totalorder %s1181, 15
        %s1183 = scalar_select %p1182, %s1181, 15
        %s1184 = smul.addr %s1183, 8
        %s1185 = scalar_lea.vmem %s2, %s1184
      $region40: #{fwd.1} parent=35 // pred_fallthru
        _
    $region36: #{fwd.1} parent=5 // pred_fallthru
      _
  $region6: #{fwd.1} parent=0 // loop_footer
    %s12 = sadd.s32 1, %s8
  $region7: #{fwd.1} parent=0 // loop_footer_branch
    %7 = sbr.rel target = $region3
  $region8: #{fwd.1} parent=0 // loop_exit
    _

</llo_original>
